<compile_context>
chip_gen: v5e
topology: v5e:2x2
jax: 0.10.0
libtpu: 0.0.40
codegen_flags: <defaults>
</compile_context>

<pallas_src>
import jax
import jax.numpy as jnp
from jax.experimental import pallas as pl
from jax.experimental.pallas import tpu as pltpu


def db_fused_kernel(x_ref, w_ref, b_ref, o_ref):
    # x_ref: (1, Cin, THW)  channels-first pixel tile
    # w_ref: (1, n_feats, Cin)  per-batch effective weight (SE scale folded in)
    # b_ref: (1, n_feats, 1)    per-batch effective bias (f32)
    x = x_ref[0]                                            # (Cin, THW)
    w = w_ref[0]                                            # (n_feats, Cin)
    acc = jnp.dot(w, x, preferred_element_type=jnp.float32)  # (n_feats, THW) f32
    acc = acc + b_ref[0]                                     # lane-broadcast bias
    o_ref[0] = acc.astype(o_ref.dtype)


def _pick_hw_tile(hw):
    """Largest lane-dense tile that evenly divides HW (fallback: whole HW)."""
    for t in (8192, 4096, 2048, 1024, 512, 256, 128):
        if hw % t == 0:
            return t
    return hw


def db_forward(x_nchw, params, *, compute_dtype=None):
    """x_nchw: (B, Cin, H, W).  Returns (B, n_feats, H, W)."""
    wd, bd, w1, b1, w2, b2, wu, bu = params
    B, Cin, H, W = x_nchw.shape
    HW = H * W
    n_feats = wu.shape[1]
    out_dtype = x_nchw.dtype
    cdt = x_nchw.dtype if compute_dtype is None else compute_dtype

    # Free, contiguous reshape: NCHW -> (B, Cin, HW); HW becomes the lane axis.
    x = x_nchw.reshape(B, Cin, HW)

    # ---- per-batch SE scale (pool is linear, so it only needs mean(x)) ----
    xf = x.astype(jnp.float32)
    mean_x = jnp.mean(xf, axis=2)                            # (B, Cin)
    m = mean_x @ wd + bd                                     # (B, D)
    h = jnp.maximum(m @ w1 + b1, 0.0)                        # (B, D//r)
    s = jax.nn.sigmoid(h @ w2 + b2)                          # (B, D)

    # ---- fold SE scale + biases into per-batch effective weight / bias ----
    # out = (x @ wd + bd) * s @ wu + bu = x @ ((wd*s)@wu) + ((bd*s)@wu + bu)
    # Stored transposed (channels-first): w_eff[b] = ((wd*s_b)@wu).T
    w_eff = jnp.einsum('cd,bd,dn->bnc', wd, s, wu)           # (B, n_feats, Cin)
    b_eff = ((bd * s) @ wu + bu)[:, :, None]                 # (B, n_feats, 1)

    x_k = x.astype(cdt)
    w_k = w_eff.astype(cdt)
    b_k = b_eff.astype(jnp.float32)                          # bias add in f32

    thw = _pick_hw_tile(HW)
    grid = (B, HW // thw)

    out = pl.pallas_call(
        db_fused_kernel,
        out_shape=jax.ShapeDtypeStruct((B, n_feats, HW), out_dtype),
        grid_spec=pltpu.PrefetchScalarGridSpec(
            num_scalar_prefetch=0,
            grid=grid,
            in_specs=[
                pl.BlockSpec((1, Cin, thw), lambda b, t: (b, 0, t)),
                pl.BlockSpec((1, n_feats, Cin), lambda b, t: (b, 0, 0)),
                pl.BlockSpec((1, n_feats, 1), lambda b, t: (b, 0, 0)),
            ],
            out_specs=pl.BlockSpec((1, n_feats, thw), lambda b, t: (b, 0, t)),
        ),
        compiler_params=pltpu.CompilerParams(
            dimension_semantics=("parallel", "parallel"),
            vmem_limit_bytes=32 * 1024 * 1024),
    )(x_k, w_k, b_k)

    # Free reshape back to NCHW.
    return out.reshape(B, n_feats, H, W)


def make_params(key, n_feats, d_feats, n_blocks, reduction=16):
    """Deterministic synthetic parameters. Weights stored as (C_in, C_out)."""
    c_in = n_feats * (n_blocks - 1)
    r = max(d_feats // reduction, 1)
    ks = jax.random.split(key, 8)

    def init(k, shape, fan_in):
        return jax.random.normal(k, shape, jnp.float32) / jnp.sqrt(fan_in)

    wd = init(ks[0], (c_in, d_feats), c_in)
    bd = init(ks[1], (1, d_feats), c_in)
    w1 = init(ks[2], (d_feats, r), d_feats)
    b1 = init(ks[3], (1, r), d_feats)
    w2 = init(ks[4], (r, d_feats), r)
    b2 = init(ks[5], (1, d_feats), r)
    wu = init(ks[6], (d_feats, n_feats), d_feats)
    bu = init(ks[7], (1, n_feats), d_feats)
    return (wd, bd, w1, b1, w2, b2, wu, bu)


def db_reference(x_nchw, params):
    """Plain-JAX reference of the PyTorch forward (for verification)."""
    wd, bd, w1, b1, w2, b2, wu, bu = params
    B, Cin, H, W = x_nchw.shape
    x = jnp.transpose(x_nchw, (0, 2, 3, 1)).reshape(B, H * W, Cin)
    t = x @ wd + bd
    m = jnp.mean(t, axis=1, keepdims=True)
    h = jnp.maximum(m @ w1 + b1, 0.0)
    s = jax.nn.sigmoid(h @ w2 + b2)
    out = (t * s) @ wu + bu
    return jnp.transpose(out.reshape(B, H, W, -1), (0, 3, 1, 2))


if __name__ == "__main__":
    # Small, consistent shapes: n_feats=32, n_blocks=3 -> Cin = 32*(3-1) = 64,
    # d_feats=32, reduction=16 -> squeeze width 2.
    n_feats, d_feats, n_blocks = 32, 32, 3
    B, H, W = 2, 16, 16
    c_in = n_feats * (n_blocks - 1)

    key = jax.random.PRNGKey(0)
    kx, kp = jax.random.split(key)
    x = jax.random.normal(kx, (B, c_in, H, W), jnp.float32)
    params = make_params(kp, n_feats, d_feats, n_blocks)

    ref = db_reference(x, params)

    # f32 path (tight tolerance).
    out = jax.block_until_ready(db_forward(x, params))
    assert out.shape == (B, n_feats, H, W)
    assert jnp.allclose(out, ref, rtol=1e-4, atol=1e-4)

    # bf16 compute path (MXU-native on v5e/v6e/v7x; f32 accumulation).
    out_bf16 = jax.block_until_ready(
        db_forward(x, params, compute_dtype=jnp.bfloat16))
    assert out_bf16.shape == (B, n_feats, H, W)
    assert jnp.allclose(out_bf16, ref, rtol=2e-2, atol=2e-2)

    print("KERNEL_OK")
</pallas_src>

<mosaic_0001>
module attributes {stable_mosaic.version = 11 : i64} {
  func.func @db_fused_kernel(%arg0: i32, %arg1: i32, %arg2: memref<1x64x256xf32, #tpu.memory_space<vmem>>, %arg3: memref<1x32x64xf32, #tpu.memory_space<vmem>>, %arg4: memref<1x32x1xf32, #tpu.memory_space<vmem>>, %arg5: memref<1x32x256xf32, #tpu.memory_space<vmem>>) attributes {dimension_semantics = [#tpu.dimension_semantics<parallel>, #tpu.dimension_semantics<parallel>], iteration_bounds = array<i64: 2, 1>, scalar_prefetch = 0 : i64, scratch_operands = 0 : i64, tpu.core_type = #tpu.core_type<tc>, window_params = [{transform_indices = @transform_0, window_bounds = array<i64: 1, 64, 256>}, {transform_indices = @transform_1, window_bounds = array<i64: 1, 32, 64>}, {transform_indices = @transform_2, window_bounds = array<i64: 1, 32, 1>}, {transform_indices = @transform_3, window_bounds = array<i64: 1, 32, 256>}]} {
    %c0 = arith.constant 0 : index
    %c0_0 = arith.constant 0 : index
    %c0_1 = arith.constant 0 : index
    %0 = vector.load %arg2[%c0, %c0_0, %c0_1] : memref<1x64x256xf32, #tpu.memory_space<vmem>>, vector<1x64x256xf32>
    %1 = vector.shape_cast %0 : vector<1x64x256xf32> to vector<64x256xf32>
    %c0_2 = arith.constant 0 : index
    %c0_3 = arith.constant 0 : index
    %c0_4 = arith.constant 0 : index
    %2 = vector.load %arg3[%c0_2, %c0_3, %c0_4] : memref<1x32x64xf32, #tpu.memory_space<vmem>>, vector<1x32x64xf32>
    %3 = vector.shape_cast %2 : vector<1x32x64xf32> to vector<32x64xf32>
    %cst = arith.constant dense<0.000000e+00> : vector<32x256xf32>
    %4 = tpu.matmul %3, %1, %cst {dimension_numbers = #tpu.dot_dimension_numbers<[1], [0], [0], [1], [0, 0, 1, 1], [], []>} : vector<32x64xf32>, vector<64x256xf32>, vector<32x256xf32> -> vector<32x256xf32>
    %c0_5 = arith.constant 0 : index
    %c0_6 = arith.constant 0 : index
    %c0_7 = arith.constant 0 : index
    %5 = vector.load %arg4[%c0_5, %c0_6, %c0_7] : memref<1x32x1xf32, #tpu.memory_space<vmem>>, vector<1x32x1xf32>
    %6 = vector.shape_cast %5 : vector<1x32x1xf32> to vector<32x1xf32>
    %7 = vector.broadcast %6 : vector<32x1xf32> to vector<32x256xf32>
    %8 = arith.addf %4, %7 : vector<32x256xf32>
    %c0_8 = arith.constant 0 : index
    %c0_9 = arith.constant 0 : index
    %c0_10 = arith.constant 0 : index
    %9 = vector.load %arg5[%c0_8, %c0_9, %c0_10] : memref<1x32x256xf32, #tpu.memory_space<vmem>>, vector<1x32x256xf32>
    %10 = vector.shape_cast %9 : vector<1x32x256xf32> to vector<32x256xf32>
    %11 = vector.shape_cast %8 : vector<32x256xf32> to vector<1x32x256xf32>
    tpu.vector_store %arg5[%c0_8, %c0_9, %c0_10], %11 {strides = array<i32>} : memref<1x32x256xf32, #tpu.memory_space<vmem>>, vector<1x32x256xf32>,
    return
  }
  func.func @transform_0(%arg0: i32, %arg1: i32) -> (i32, i32, i32) {
    %c0_i32 = arith.constant 0 : i32
    %c0_i32_0 = arith.constant 0 : i32
    return %arg0, %c0_i32, %arg1 : i32, i32, i32
  }
  func.func @transform_1(%arg0: i32, %arg1: i32) -> (i32, i32, i32) {
    %c0_i32 = arith.constant 0 : i32
    %c0_i32_0 = arith.constant 0 : i32
    %c0_i32_1 = arith.constant 0 : i32
    return %arg0, %c0_i32, %c0_i32_0 : i32, i32, i32
  }
  func.func @transform_2(%arg0: i32, %arg1: i32) -> (i32, i32, i32) {
    %c0_i32 = arith.constant 0 : i32
    %c0_i32_0 = arith.constant 0 : i32
    %c0_i32_1 = arith.constant 0 : i32
    return %arg0, %c0_i32, %c0_i32_0 : i32, i32, i32
  }
  func.func @transform_3(%arg0: i32, %arg1: i32) -> (i32, i32, i32) {
    %c0_i32 = arith.constant 0 : i32
    %c0_i32_0 = arith.constant 0 : i32
    return %arg0, %c0_i32, %arg1 : i32, i32, i32
  }
}

</mosaic_0001>

<llo_original>
// kernel: tpu_custom_call.1
$region0: #{tpu_custom_call.1}
  #allocation0 [shape = 'u32[]', space=smem, size = 0x4, offset = 0x4, fixed_abs, tag = 'smem constant byte address 0x4 - core index']
  #allocation1 [shape = 'u32[72,128]{1,0:T(1,128)}', space=vmem, size = 0x9000, scoped, tag = 'internal scratch']
  %s0 = inlined_call_operand.hbm [shape: f32[2,64,256], index: 0, kind: input, shape index: {}]
  %s1 = inlined_call_operand.vmem [shape: f32[2,32,64], index: 1, kind: input, shape index: {}]
  %s2 = inlined_call_operand.vmem [shape: f32[2,32,1], index: 2, kind: input, shape index: {}]
  %s3 = inlined_call_operand.hbm [shape: f32[2,32,256], index: 3, kind: output, shape index: {}]
  %s4 = sld [smem:[#allocation0]]
  $region49: #{tpu_custom_call.1} parent=0
    _
  %s6 = ssub.s32 1, %s4
  %s7 = scalar_select 0, %s6, %s4
  $region1: #{tpu_custom_call.1} parent=0
    #allocation2 [shape = 'u8[131072]{0}', space=vmem, size = 0x20000, scoped, tag = 'input window, operand 0']
    #allocation3 [shape = 's32[2]{0}', space=sflag, size = 0x8, scoped, tag = 'scoped memory for tpu_custom_call.1']
    #allocation4 [shape = 's32[2]{0}', space=sflag, size = 0x8, scoped, tag = 'scoped memory for tpu_custom_call.1']
    #allocation5 [shape = 'u8[65536]{0}', space=vmem, size = 0x10000, scoped, tag = 'output window, operand 0']
    %8 = vsyncpa [#allocation3], 0
    %s9 = scalar_lea.sflag [#allocation3], 1
    %10 = vsyncpa %s9, 0
    %11 = vsyncpa [#allocation4], 0
    %s12 = scalar_lea.sflag [#allocation4], 1
    %13 = vsyncpa %s12, 0
    loop: start=0, step=1, limit=4
    $region2: #{tpu_custom_call.1} parent=1 // loop_pre_header
      _
    $region3: #{tpu_custom_call.1} parent=1 // loop_header
      %s15 = sphi 0, %s19
      %p16 = scmp.ge.s32.totalorder %s15, 4
      %s22 = sphi 0, %s34
      %s23 = sphi 0, %s30
      %s24 = sphi 0, %s22
      %s25 = sphi 0, %s23
      %s26 = sphi 0, %s24
      %s27 = sphi 0, %s25
      %s39 = sphi 0, %s41
      %s42 = sphi 0, %s39
      %s43 = sphi 0, %s42
      %s59 = sphi 0, %s43
      %s65 = sphi 0, %s67
      %s68 = sphi 0, %s65
      %s69 = sphi 0, %s68
      %s85 = sphi 0, %s69
      %s91 = sphi 0, %s93
      %s94 = sphi 0, %s91
      %s95 = sphi 0, %s94
      %s111 = sphi 0, %s95
      %s119 = sphi 0, %s121
      %s122 = sphi 0, %s119
      %s123 = sphi 0, %s122
      %s139 = sphi 0, %s123
    $region4: #{tpu_custom_call.1} parent=1 // loop_header_branch
      %18 = sbr.rel (%p16) target = $region8
    $region5: #{tpu_custom_call.1} parent=1 // loop_body
      %s20 = ssub.s32 %s15, 1
      %s21 = ssub.s32 %s15, 2
      %s28 = sadd.s32 1, %s23
      %p29 = scmp.ge.s32.totalorder %s28, 1
      %s30 = scalar_select %p29, 0, %s28
      %s31 = sadd.s32 1, %s22
      %s32 = scalar_select %p29, %s31, %s22
      %p33 = scmp.ge.s32.totalorder %s32, 2
      %s34 = scalar_select %p33, 0, %s32
      %s35 = ssub.s32 %s22, %s34
      %s36 = ssub.s32 %s23, %s30
      %s37 = sor.u32 %s35, %s36
      %p38 = scmp.eq.s32.totalorder %s37, 0
      %s40 = sadd.s32 %s39, 1
      %s41 = scalar_select %p38, %s39, %s40
      %p44 = pneg %p38
      %p45 = scmp.eq.s32.totalorder %s15, 1
      %p46 = por %p44, %p45
      %p47 = scmp.ne.s32.totalorder %s39, %s42
      %p48 = scmp.eq.s32.totalorder %s15, 0
      %p49 = por %p47, %p48
      %p50 = scmp.ne.s32.totalorder %s39, %s42
      %p51 = scmp.eq.s32.totalorder %s20, 1
      %p52 = por %p50, %p51
      %p53 = scmp.ne.s32.totalorder %s42, %s43
      %p54 = scmp.eq.s32.totalorder %s20, 0
      %p55 = por %p53, %p54
      %p56 = scmp.ne.s32.totalorder %s42, %s43
      %p57 = scmp.eq.s32.totalorder %s21, 1
      %p58 = por %p56, %p57
      %p60 = scmp.ne.s32.totalorder %s43, %s59
      %p61 = scmp.eq.s32.totalorder %s21, 0
      %p62 = por %p60, %p61
      %s63 = ssub.s32 %s22, %s34
      %p64 = scmp.eq.s32.totalorder %s63, 0
      %s66 = sadd.s32 %s65, 1
      %s67 = scalar_select %p64, %s65, %s66
      %p70 = pneg %p64
      %p71 = scmp.eq.s32.totalorder %s15, 1
      %p72 = por %p70, %p71
      %p73 = scmp.ne.s32.totalorder %s65, %s68
      %p74 = scmp.eq.s32.totalorder %s15, 0
      %p75 = por %p73, %p74
      %p76 = scmp.ne.s32.totalorder %s65, %s68
      %p77 = scmp.eq.s32.totalorder %s20, 1
      %p78 = por %p76, %p77
      %p79 = scmp.ne.s32.totalorder %s68, %s69
      %p80 = scmp.eq.s32.totalorder %s20, 0
      %p81 = por %p79, %p80
      %p82 = scmp.ne.s32.totalorder %s68, %s69
      %p83 = scmp.eq.s32.totalorder %s21, 1
      %p84 = por %p82, %p83
      %p86 = scmp.ne.s32.totalorder %s69, %s85
      %p87 = scmp.eq.s32.totalorder %s21, 0
      %p88 = por %p86, %p87
      %s89 = ssub.s32 %s22, %s34
      %p90 = scmp.eq.s32.totalorder %s89, 0
      %s92 = sadd.s32 %s91, 1
      %s93 = scalar_select %p90, %s91, %s92
      %p96 = pneg %p90
      %p97 = scmp.eq.s32.totalorder %s15, 1
      %p98 = por %p96, %p97
      %p99 = scmp.ne.s32.totalorder %s91, %s94
      %p100 = scmp.eq.s32.totalorder %s15, 0
      %p101 = por %p99, %p100
      %p102 = scmp.ne.s32.totalorder %s91, %s94
      %p103 = scmp.eq.s32.totalorder %s20, 1
      %p104 = por %p102, %p103
      %p105 = scmp.ne.s32.totalorder %s94, %s95
      %p106 = scmp.eq.s32.totalorder %s20, 0
      %p107 = por %p105, %p106
      %p108 = scmp.ne.s32.totalorder %s94, %s95
      %p109 = scmp.eq.s32.totalorder %s21, 1
      %p110 = por %p108, %p109
      %p112 = scmp.ne.s32.totalorder %s95, %s111
      %p113 = scmp.eq.s32.totalorder %s21, 0
      %p114 = por %p112, %p113
      %s115 = ssub.s32 %s22, %s34
      %s116 = ssub.s32 %s23, %s30
      %s117 = sor.u32 %s115, %s116
      %p118 = scmp.eq.s32.totalorder %s117, 0
      %s120 = sadd.s32 %s119, 1
      %s121 = scalar_select %p118, %s119, %s120
      %p124 = pneg %p118
      %p125 = scmp.eq.s32.totalorder %s15, 1
      %p126 = por %p124, %p125
      %p127 = scmp.ne.s32.totalorder %s119, %s122
      %p128 = scmp.eq.s32.totalorder %s15, 0
      %p129 = por %p127, %p128
      %p130 = scmp.ne.s32.totalorder %s119, %s122
      %p131 = scmp.eq.s32.totalorder %s20, 1
      %p132 = por %p130, %p131
      %p133 = scmp.ne.s32.totalorder %s122, %s123
      %p134 = scmp.eq.s32.totalorder %s20, 0
      %p135 = por %p133, %p134
      %p136 = scmp.ne.s32.totalorder %s122, %s123
      %p137 = scmp.eq.s32.totalorder %s21, 1
      %p138 = por %p136, %p137
      %p140 = scmp.ne.s32.totalorder %s123, %s139
      %p141 = scmp.eq.s32.totalorder %s21, 0
      %p142 = por %p140, %p141
      %p143 = scmp.le.s32.totalorder 1, %s15
      %p144 = scmp.lt.s32.totalorder %s15, 3
      %p145 = pnand %p143, %p144
      %p146 = pneg %p145
      // Predicated region
      $region9: #{tpu_custom_call.1} parent=5 // pred_check
        _
      $region10: #{tpu_custom_call.1} parent=5 // pred_check_branch
        %148 = sbr.rel (%p145) target = $region12
      $region11: #{tpu_custom_call.1} parent=5 // pred_region
        %s149 = ssub.s32 %s15, 1
      $region12: #{tpu_custom_call.1} parent=5 // pred_fallthru
        _
      %p150 = scmp.lt.s32.totalorder %s15, 2
      // Predicated region
      $region13: #{tpu_custom_call.1} parent=5 // pred_check
        %p151 = pneg %p150
      $region14: #{tpu_custom_call.1} parent=5 // pred_check_branch
        %153 = sbr.rel (%p151) target = $region16
      $region15: #{tpu_custom_call.1} parent=5 // pred_region
        // Predicated region
        $region17: #{tpu_custom_call.1} parent=15 // pred_check
          %p154 = pneg %p49
        $region18: #{tpu_custom_call.1} parent=15 // pred_check_branch
          %156 = sbr.rel (%p154) target = $region20
        $region19: #{tpu_custom_call.1} parent=15 // pred_region
          %s157 = sand.u32 %s39, 1
          %s158 = scalar_lea.sflag [#allocation3], %s157
          %s159 = sand.u32 %s39, 1
          %s160 = smul.addr %s159, 128
          %s161 = scalar_lea.vmem [#allocation2], %s160
          %s162 = smul.u32 2, %s23
          %164 = vsyncadd %s158, 0
          %s165 = smul.addr %s22, 16
          %s166 = sadd.s32 %s162, %s165
          %s167 = smul.addr %s166, 8
          %s168 = scalar_lea.hbm %s0, %s167
          %s169 = sshll.u32 %s168, 4
          %s170 = int_to_ptr.hbm [resolvable:$true] %s169
          %s171 = sshll.u32 %s161, 4
          %s172 = int_to_ptr.vmem [resolvable:$true] %s171
          %177 = dma.hbm_to_vmem [thread:$0]  %s170, 2048, %s172, %s158, 256, 256, 16
        $region20: #{tpu_custom_call.1} parent=15 // pred_fallthru
          _
        // Predicated region
        $region21: #{tpu_custom_call.1} parent=15 // pred_check
          %p178 = pneg %p75
        $region22: #{tpu_custom_call.1} parent=15 // pred_check_branch
          %180 = sbr.rel (%p178) target = $region24
        $region23: #{tpu_custom_call.1} parent=15 // pred_region
          %p181 = scmp.lt.s32.totalorder %s22, 1
          %s182 = scalar_select %p181, %s22, 1
          %s183 = smul.addr %s182, 4
          %s184 = smul.addr %s183, 8
          %s185 = scalar_lea.vmem %s1, %s184
        $region24: #{tpu_custom_call.1} parent=15 // pred_fallthru
          _
        // Predicated region
        $region25: #{tpu_custom_call.1} parent=15 // pred_check
          %p186 = pneg %p101
        $region26: #{tpu_custom_call.1} parent=15 // pred_check_branch
          %188 = sbr.rel (%p186) target = $region28
        $region27: #{tpu_custom_call.1} parent=15 // pred_region
          %p189 = scmp.lt.s32.totalorder %s22, 1
          %s190 = scalar_select %p189, %s22, 1
          %s191 = smul.addr %s190, 4
          %s192 = smul.addr %s191, 8
          %s193 = scalar_lea.vmem %s2, %s192
        $region28: #{tpu_custom_call.1} parent=15 // pred_fallthru
          _
      $region16: #{tpu_custom_call.1} parent=5 // pred_fallthru
        _
      %p194 = scmp.le.s32.totalorder 1, %s15
      %p195 = scmp.lt.s32.totalorder %s15, 3
      %p196 = pnand %p194, %p195
      %p197 = pneg %p196
      // Predicated region
      $region29: #{tpu_custom_call.1} parent=5 // pred_check
        _
      $region30: #{tpu_custom_call.1} parent=5 // pred_check_branch
        %199 = sbr.rel (%p196) target = $region32
      $region31: #{tpu_custom_call.1} parent=5 // pred_region
        %s200 = ssub.s32 %s15, 1
        %s201 = sand.u32 %s42, 1
        %s202 = scalar_lea.sflag [#allocation3], %s201
        %s203 = sand.u32 %s42, 1
        %s204 = smul.addr %s203, 128
        %s205 = scalar_lea.vmem [#allocation2], %s204
        // Predicated region
        $region33: #{tpu_custom_call.1} parent=31 // pred_check
          %p206 = pneg %p55
        $region34: #{tpu_custom_call.1} parent=31 // pred_check_branch
          %208 = sbr.rel (%p206) target = $region36
        $region35: #{tpu_custom_call.1} parent=31 // pred_region
          %210 = dma.done %s202, 2048
        $region36: #{tpu_custom_call.1} parent=31 // pred_fallthru
          _
        %s211 = sand.u32 %s42, 1
        %s212 = scalar_lea.sflag [#allocation3], %s211
        %s213 = sand.u32 %s42, 1
        %s214 = smul.addr %s213, 128
        %s215 = scalar_lea.vmem [#allocation2], %s214
        %p216 = pneg %p55
        %p217 = pneg %p52
        %p218 = scmp.lt.s32.totalorder %s24, 1
        %s219 = scalar_select %p218, %s24, 1
        %s220 = smul.addr %s219, 4
        %s221 = smul.addr %s220, 8
        %s222 = scalar_lea.vmem %s1, %s221
        %p223 = pneg %p81
        %p224 = pneg %p78
        %p225 = scmp.lt.s32.totalorder %s24, 1
        %s226 = scalar_select %p225, %s24, 1
        %s227 = smul.addr %s226, 4
        %s228 = smul.addr %s227, 8
        %s229 = scalar_lea.vmem %s2, %s228
        %p230 = pneg %p107
        %p231 = pneg %p104
        %p232 = pneg %p135
        %p233 = pneg %p132
        %s234 = sand.u32 %s122, 1
        %s235 = scalar_lea.sflag [#allocation4], %s234
        %s236 = sand.u32 %s122, 1
        %s237 = smul.addr %s236, 64
        %s238 = scalar_lea.vmem [#allocation5], %s237
        %s239 = smul.u32 2, %s25
        %p240 = scmp.lt.s32.totalorder %s24, 1
        %s241 = scalar_select %p240, %s24, 1
        %s242 = smul.addr %s241, 4
        %s243 = smul.addr %s242, 8
        %s244 = scalar_lea.vmem %s1, %s243
        %p245 = scmp.lt.s32.totalorder %s24, 1
        %s246 = scalar_select %p245, %s24, 1
        %s247 = smul.addr %s246, 4
        %s248 = smul.addr %s247, 8
        %s249 = scalar_lea.vmem %s2, %s248
        %s250 = smul.u32 2, %s25
        %v251 = vld [vmem:[%s205] sm:$0xff]
        %v252 = vld [vmem:[%s205 + $0x8] sm:$0xff]
        %v253 = vld [vmem:[%s205 + $0x10] sm:$0xff]
        %v254 = vld [vmem:[%s205 + $0x18] sm:$0xff]
        %v255 = vld [vmem:[%s205 + $0x20] sm:$0xff]
        %v256 = vld [vmem:[%s205 + $0x28] sm:$0xff]
        %v257 = vld [vmem:[%s205 + $0x30] sm:$0xff]
        %v258 = vld [vmem:[%s205 + $0x38] sm:$0xff]
        %v259 = vld [vmem:[%s205 + $0x40] sm:$0xff]
        %v260 = vld [vmem:[%s205 + $0x48] sm:$0xff]
        %v261 = vld [vmem:[%s205 + $0x50] sm:$0xff]
        %v262 = vld [vmem:[%s205 + $0x58] sm:$0xff]
        %v263 = vld [vmem:[%s205 + $0x60] sm:$0xff]
        %v264 = vld [vmem:[%s205 + $0x68] sm:$0xff]
        %v265 = vld [vmem:[%s205 + $0x70] sm:$0xff]
        %v266 = vld [vmem:[%s205 + $0x78] sm:$0xff]
        %v267 = vld [vmem:[%s244] sm:$0xff]
        %v268 = vld [vmem:[%s244 + $0x8] sm:$0xff]
        %v269 = vld [vmem:[%s244 + $0x10] sm:$0xff]
        %v270 = vld [vmem:[%s244 + $0x18] sm:$0xff]
        %v271 = vld [vmem:[%s249] sm:$0xff]
        %v272 = vld [vmem:[%s249 + $0x8] sm:$0xff]
        %v273 = vld [vmem:[%s249 + $0x10] sm:$0xff]
        %v274 = vld [vmem:[%s249 + $0x18] sm:$0xff]
        %276 = vset.pattern.permute.xlu0 0
        %277 = vperm.xlu0 %276, %v271
        %v278 = vpop.permute.xlu0 %277
        %281 = vset.pattern.permute.xlu0 0
        %282 = vperm.xlu0 %281, %v272
        %v283 = vpop.permute.xlu0 %282
        %286 = vset.pattern.permute.xlu0 0
        %287 = vperm.xlu0 %286, %v273
        %v288 = vpop.permute.xlu0 %287
        %291 = vset.pattern.permute.xlu0 0
        %292 = vperm.xlu0 %291, %v274
        %v293 = vpop.permute.xlu0 %292
        %vm295 = vcmask 523264
        %v297 = vsel %vm295, %v267, 0
        %v300 = vsel %vm295, %v268, 0
        %v303 = vsel %vm295, %v269, 0
        %v306 = vsel %vm295, %v270, 0
        %308 = vmatpush.msra.mxu0 0.0
        %309 = vmatpush.msra.mxu0 0.0
        %310 = vmatpush.msra.mxu0 0.0
        %311 = vmatpush.msra.mxu0 0.0
        %312 = vmatpush.msra.mxu0 0.0
        %313 = vmatpush.msra.mxu0 0.0
        %314 = vmatpush.msra.mxu0 0.0
        %315 = vmatpush.msra.mxu0 0.0
        %316 = vmatpush.msra.mxu0 %v265
        %317 = vmatpush.msra.mxu0 %v263
        %318 = vmatpush.msra.mxu0 %v261
        %319 = vmatpush.msra.mxu0 %v259
        %320 = vmatpush.msra.mxu0 %v257
        %321 = vmatpush.msra.mxu0 %v255
        %322 = vmatpush.msra.mxu0 %v253
        %323 = vmatpush.msra.mxu0 %v251
        %324 = vmatmul.f32.gmra.mxu0 %v297
        %v325 = vpop.f32.mrf.mxu0
        %v326 = vadd.f32 %v278, %v325
        %327 = vmatmul.f32.gmra.mxu0 %v300
        %v328 = vpop.f32.mrf.mxu0
        %v329 = vadd.f32 %v283, %v328
        %330 = vmatmul.f32.gmra.mxu0 %v303
        %v331 = vpop.f32.mrf.mxu0
        %v332 = vadd.f32 %v288, %v331
        %333 = vmatmul.f32.gmra.mxu0 %v306
        %v334 = vpop.f32.mrf.mxu0
        %v335 = vadd.f32 %v293, %v334
        %336 = vdwg.mxu0
        %337 = vmatpush.msra.mxu0 0.0
        %338 = vmatpush.msra.mxu0 0.0
        %339 = vmatpush.msra.mxu0 0.0
        %340 = vmatpush.msra.mxu0 0.0
        %341 = vmatpush.msra.mxu0 0.0
        %342 = vmatpush.msra.mxu0 0.0
        %343 = vmatpush.msra.mxu0 0.0
        %344 = vmatpush.msra.mxu0 0.0
        %345 = vmatpush.msra.mxu0 %v266
        %346 = vmatpush.msra.mxu0 %v264
        %347 = vmatpush.msra.mxu0 %v262
        %348 = vmatpush.msra.mxu0 %v260
        %349 = vmatpush.msra.mxu0 %v258
        %350 = vmatpush.msra.mxu0 %v256
        %351 = vmatpush.msra.mxu0 %v254
        %352 = vmatpush.msra.mxu0 %v252
        %353 = vmatmul.f32.gmra.mxu0 %v297
        %v354 = vpop.f32.mrf.mxu0
        %v355 = vadd.f32 %v278, %v354
        %356 = vmatmul.f32.gmra.mxu0 %v300
        %v357 = vpop.f32.mrf.mxu0
        %v358 = vadd.f32 %v283, %v357
        %359 = vmatmul.f32.gmra.mxu0 %v303
        %v360 = vpop.f32.mrf.mxu0
        %v361 = vadd.f32 %v288, %v360
        %362 = vmatmul.f32.gmra.mxu0 %v306
        %v363 = vpop.f32.mrf.mxu0
        %v364 = vadd.f32 %v293, %v363
        %365 = vdwg.mxu0
        %366 = vst [vmem:[%s238] sm:$0xff] %v326
        %367 = vst [vmem:[%s238 + $0x8] sm:$0xff] %v355
        %368 = vst [vmem:[%s238 + $0x10] sm:$0xff] %v329
        %369 = vst [vmem:[%s238 + $0x18] sm:$0xff] %v358
        %370 = vst [vmem:[%s238 + $0x20] sm:$0xff] %v332
        %371 = vst [vmem:[%s238 + $0x28] sm:$0xff] %v361
        %372 = vst [vmem:[%s238 + $0x30] sm:$0xff] %v335
        %373 = vst [vmem:[%s238 + $0x38] sm:$0xff] %v364
        %s374 = sand.u32 %s122, 1
        %s375 = scalar_lea.sflag [#allocation4], %s374
        %s376 = sand.u32 %s122, 1
        %s377 = smul.addr %s376, 64
        %s378 = scalar_lea.vmem [#allocation5], %s377
        // Predicated region
        $region37: #{tpu_custom_call.1} parent=31 // pred_check
          %p379 = pneg %p132
        $region38: #{tpu_custom_call.1} parent=31 // pred_check_branch
          %381 = sbr.rel (%p379) target = $region40
        $region39: #{tpu_custom_call.1} parent=31 // pred_region
          %s382 = smul.u32 2, %s25
          %384 = vsyncadd %s375, 0
          %s385 = smul.addr %s24, 8
          %s386 = sadd.s32 %s382, %s385
          %s387 = smul.addr %s386, 8
          %s388 = scalar_lea.hbm %s3, %s387
          %s389 = sshll.u32 %s378, 4
          %s390 = int_to_ptr.vmem [resolvable:$true] %s389
          %s391 = sshll.u32 %s388, 4
          %s392 = int_to_ptr.hbm [resolvable:$true] %s391
          %397 = dma.vmem_to_hbm [thread:$0]  %s390, 1024, %s392, %s375, 256, 256, 16
        $region40: #{tpu_custom_call.1} parent=31 // pred_fallthru
          _
      $region32: #{tpu_custom_call.1} parent=5 // pred_fallthru
        _
      %p398 = scmp.le.s32.totalorder 2, %s15
      // Predicated region
      $region41: #{tpu_custom_call.1} parent=5 // pred_check
        %p399 = pneg %p398
      $region42: #{tpu_custom_call.1} parent=5 // pred_check_branch
        %401 = sbr.rel (%p399) target = $region44
      $region43: #{tpu_custom_call.1} parent=5 // pred_region
        %s402 = ssub.s32 %s15, 2
        // Predicated region
        $region45: #{tpu_custom_call.1} parent=43 // pred_check
          %p403 = pneg %p138
        $region46: #{tpu_custom_call.1} parent=43 // pred_check_branch
          %405 = sbr.rel (%p403) target = $region48
        $region47: #{tpu_custom_call.1} parent=43 // pred_region
          %s406 = sand.u32 %s123, 1
          %s407 = scalar_lea.sflag [#allocation4], %s406
          %s408 = sand.u32 %s123, 1
          %s409 = smul.addr %s408, 64
          %s410 = scalar_lea.vmem [#allocation5], %s409
          %412 = dma.done %s407, 1024
        $region48: #{tpu_custom_call.1} parent=43 // pred_fallthru
          _
      $region44: #{tpu_custom_call.1} parent=5 // pred_fallthru
        _
    $region6: #{tpu_custom_call.1} parent=1 // loop_footer
      %s19 = sadd.s32 1, %s15
    $region7: #{tpu_custom_call.1} parent=1 // loop_footer_branch
      %14 = sbr.rel target = $region3
    $region8: #{tpu_custom_call.1} parent=1 // loop_exit
      _
    %413 = vsyncpa [#allocation3], 1
    %s414 = scalar_lea.sflag [#allocation3], 1
    %415 = vsyncpa %s414, 1
    %416 = vsyncpa [#allocation4], 1
    %s417 = scalar_lea.sflag [#allocation4], 1
    %418 = vsyncpa %s417, 1

</llo_original>
